<compile_context>
chip_gen: v5e
topology: v5e:2x2
jax: 0.10.0
libtpu: 0.0.40
codegen_flags: <defaults>
</compile_context>

<pallas_src>
import jax
import jax.numpy as jnp
from jax import lax
from jax.experimental import pallas as pl
from jax.experimental.pallas import tpu as pltpu

_LANE = 128


def _round_up(v, m):
    return ((v + m - 1) // m) * m


# ---------------------------------------------------------------------------
# Fused kernel: normalize adjacency once, run all GCN layers, write final x.
# One grid step == one batch element; all intermediates stay in VMEM/vregs.
# ---------------------------------------------------------------------------
def _make_fused_kernel(num_layers):
    def kernel(*refs):
        x_ref, adj_ref = refs[0], refs[1]
        wb_refs = refs[2:2 + 2 * num_layers]
        out_ref = refs[2 + 2 * num_layers]

        # --- symmetric GCN normalization with self loops (computed once) ---
        a = adj_ref[0]                                     # (N, N) bf16, 0/1 exact
        n = a.shape[0]
        row = lax.broadcasted_iota(jnp.int32, (n, 1), 0)
        col = lax.broadcasted_iota(jnp.int32, (1, n), 1)
        a = jnp.where(row == col, jnp.ones((), a.dtype), a)   # diag = 1
        # degree / rsqrt kept in f32 (exact accumulation, v5e has no bf16 VPU)
        deg = jnp.sum(a.astype(jnp.float32), axis=-1, keepdims=True)
        d = lax.rsqrt(jnp.maximum(deg, 1.0))               # clamp(min=1) ** -0.5, (N,1)

        # --- chain of GCN layers; An is folded into d-scalings:
        #     An @ y == d * (A' @ (d * y))                                ---
        x = x_ref[0]                                        # (N, F0_pad) bf16
        for l in range(num_layers):
            w = wb_refs[2 * l][...]                         # (Fin_pad, Fout_pad) bf16
            b = wb_refs[2 * l + 1][...]                     # (1, Fout_pad) f32
            fin_tiles = pl.cdiv(w.shape[0], _LANE)
            fout_tiles = pl.cdiv(w.shape[1], _LANE)
            if fout_tiles > fin_tiles:
                # (An @ x) @ W : NxN contraction runs against the narrower dim
                g = jnp.dot(a, (d * x).astype(jnp.bfloat16),
                            preferred_element_type=jnp.float32)
                g = d * g
                out = jnp.dot(g.astype(jnp.bfloat16), w,
                              preferred_element_type=jnp.float32) + b
            else:
                # An @ (x @ W)
                h = jnp.dot(x.astype(jnp.bfloat16), w,
                            preferred_element_type=jnp.float32)
                out = d * jnp.dot(a, (d * h).astype(jnp.bfloat16),
                                  preferred_element_type=jnp.float32) + b
            x = jnp.maximum(out, 0.0)                       # ReLU in f32

        out_ref[0] = x.astype(out_ref.dtype)

    return kernel


# ---------------------------------------------------------------------------
# DenseNoPoolBlock forward (forced_embeddings=None, mask=None path).
# ---------------------------------------------------------------------------
def dense_no_pool_block_forward(x, adj, params):
    B, N, f0 = x.shape
    num_layers = len(params)
    fout_last = params[-1][0].shape[0]

    # Host-side prep: pad feature dims to multiples of 128 (lane-dense),
    # transpose weights to (Fin, Fout), cast MXU operands to bf16.
    f_sizes = [f0] + [w.shape[0] for (w, _) in params]
    f_pads = [_round_up(max(f, 1), _LANE) for f in f_sizes]

    x_p = jnp.zeros((B, N, f_pads[0]), jnp.bfloat16)
    x_p = x_p.at[..., :f0].set(x.astype(jnp.bfloat16))
    adj_bf = adj.astype(jnp.bfloat16)                       # 0/1 adjacency exact in bf16

    wts, bs = [], []
    for l, (w, b) in enumerate(params):
        fout, fin = w.shape
        fin_p, fout_p = f_pads[l], f_pads[l + 1]
        wt = jnp.zeros((fin_p, fout_p), jnp.bfloat16)
        wt = wt.at[:fin, :fout].set(jnp.asarray(w).T.astype(jnp.bfloat16))
        bp = jnp.zeros((1, fout_p), jnp.float32)
        bp = bp.at[0, :fout].set(jnp.asarray(b).astype(jnp.float32))
        wts.append(wt)
        bs.append(bp)

    fout_last_p = f_pads[-1]

    in_specs = [
        pl.BlockSpec((1, N, f_pads[0]), lambda i: (i, 0, 0)),   # x (bf16, padded)
        pl.BlockSpec((1, N, N), lambda i: (i, 0, 0)),           # adj (bf16)
    ]
    args = [x_p, adj_bf]
    for wt, bp in zip(wts, bs):
        in_specs.append(pl.BlockSpec(wt.shape, lambda i: (0, 0)))
        in_specs.append(pl.BlockSpec(bp.shape, lambda i: (0, 0)))
        args.append(wt)
        args.append(bp)

    # VMEM budget: double-buffered adj/x/out + weights + elementwise transients.
    vmem = 2 * N * N * 2 + 2 * N * f_pads[0] * 2 + 2 * N * fout_last_p * 4
    for l in range(num_layers):
        vmem += 2 * (f_pads[l] * f_pads[l + 1] * 2 + f_pads[l + 1] * 4)
    vmem += 6 * N * N * 4
    vmem_limit = int(min(max(2 * vmem, 32 * 1024 * 1024), 64 * 1024 * 1024))

    out_p = pl.pallas_call(
        _make_fused_kernel(num_layers),
        out_shape=jax.ShapeDtypeStruct((B, N, fout_last_p), jnp.float32),
        grid_spec=pltpu.PrefetchScalarGridSpec(
            num_scalar_prefetch=0,
            grid=(B,),
            in_specs=in_specs,
            out_specs=pl.BlockSpec((1, N, fout_last_p), lambda i: (i, 0, 0)),
        ),
        compiler_params=pltpu.CompilerParams(
            dimension_semantics=("parallel",),
            vmem_limit_bytes=vmem_limit),
    )(*args)

    new_x = out_p[..., :fout_last]
    # matches: return (x, adj, None, None, 0, None, None, x, mask)
    return (new_x, adj, None, None, 0, None, None, new_x, None)


# ---------------------------------------------------------------------------
# Pure-JAX f32 reference for verification.
# ---------------------------------------------------------------------------
def _reference(x, adj, params):
    B, N, _ = adj.shape
    eye = jnp.eye(N, dtype=adj.dtype)
    a = jnp.where(eye[None] > 0, 1.0, adj)
    deg = jnp.maximum(a.sum(-1), 1.0)                       # clamp(min=1)
    d = deg ** -0.5
    an = d[:, :, None] * a * d[:, None, :]
    for (w, b) in params:
        h = jnp.einsum("bnf,of->bno", x, w)                 # x @ W.T
        x = jax.nn.relu(jnp.einsum("bnm,bmo->bno", an, h) + b)
    return x


def _glorot(key, shape):
    fan_out, fan_in = shape
    limit = (6.0 / (fan_in + fan_out)) ** 0.5
    return jax.random.uniform(key, shape, jnp.float32, -limit, limit)


if __name__ == "__main__":
    key = jax.random.PRNGKey(0)
    embedding_sizes = [4, 32, 16]                  # two DenseGCNConv layers
    B, N = 2, 16

    k_x, k_a, *k_ws = jax.random.split(key, 2 + len(embedding_sizes) - 1)
    x = jax.random.normal(k_x, (B, N, embedding_sizes[0]), jnp.float32)
    # 0/1 adjacency
    adj = (jax.random.uniform(k_a, (B, N, N)) > 0.7).astype(jnp.float32)

    params = []
    for i in range(len(embedding_sizes) - 1):
        w = _glorot(k_ws[i], (embedding_sizes[i + 1], embedding_sizes[i]))
        b = jnp.zeros((embedding_sizes[i + 1],), jnp.float32)  # DenseGCNConv bias init
        params.append((w, b))

    out = dense_no_pool_block_forward(x, adj, params)
    new_x = jax.block_until_ready(out[0])

    ref = _reference(x, adj, params)
    assert new_x.shape == (B, N, embedding_sizes[-1])
    # bf16 MXU operands -> compare at bf16-level tolerance against the f32 ref.
    assert jnp.allclose(new_x, ref, atol=5e-2, rtol=5e-2), "mismatch vs reference"
    print("KERNEL_OK")
</pallas_src>

<mosaic_0001>
module attributes {stable_mosaic.version = 11 : i64} {
  func.func @kernel(%arg0: i32, %arg1: memref<1x16x128xbf16, #tpu.memory_space<vmem>>, %arg2: memref<1x16x16xbf16, #tpu.memory_space<vmem>>, %arg3: memref<128x128xbf16, #tpu.memory_space<vmem>>, %arg4: memref<1x128xf32, #tpu.memory_space<vmem>>, %arg5: memref<128x128xbf16, #tpu.memory_space<vmem>>, %arg6: memref<1x128xf32, #tpu.memory_space<vmem>>, %arg7: memref<1x16x128xf32, #tpu.memory_space<vmem>>) attributes {dimension_semantics = [#tpu.dimension_semantics<parallel>], iteration_bounds = array<i64: 2>, scalar_prefetch = 0 : i64, scratch_operands = 0 : i64, tpu.core_type = #tpu.core_type<tc>, window_params = [{transform_indices = @transform_0, window_bounds = array<i64: 1, 16, 128>}, {transform_indices = @transform_1, window_bounds = array<i64: 1, 16, 16>}, {pipeline_mode = #tpu.pipeline_mode<synchronous>, transform_indices = @transform_2, window_bounds = array<i64: 128, 128>}, {pipeline_mode = #tpu.pipeline_mode<synchronous>, transform_indices = @transform_3, window_bounds = array<i64: 1, 128>}, {pipeline_mode = #tpu.pipeline_mode<synchronous>, transform_indices = @transform_4, window_bounds = array<i64: 128, 128>}, {pipeline_mode = #tpu.pipeline_mode<synchronous>, transform_indices = @transform_5, window_bounds = array<i64: 1, 128>}, {transform_indices = @transform_6, window_bounds = array<i64: 1, 16, 128>}]} {
    %c0 = arith.constant 0 : index
    %c0_0 = arith.constant 0 : index
    %c0_1 = arith.constant 0 : index
    %0 = vector.load %arg2[%c0, %c0_0, %c0_1] : memref<1x16x16xbf16, #tpu.memory_space<vmem>>, vector<1x16x16xbf16>
    %1 = vector.shape_cast %0 : vector<1x16x16xbf16> to vector<16x16xbf16>
    %2 = tpu.iota {dimensions = array<i32: 0>} : vector<16x1xi32>
    %3 = tpu.iota {dimensions = array<i32: 1>} : vector<1x16xi32>
    %4 = vector.broadcast %2 : vector<16x1xi32> to vector<16x16xi32>
    %5 = vector.broadcast %3 : vector<1x16xi32> to vector<16x16xi32>
    %6 = arith.cmpi eq, %4, %5 : vector<16x16xi32>
    %cst = arith.constant 1.000000e+00 : bf16
    %7 = vector.broadcast %cst : bf16 to vector<16x16xbf16>
    %8 = arith.select %6, %7, %1 : vector<16x16xi1>, vector<16x16xbf16>
    %9 = arith.extf %8 : vector<16x16xbf16> to vector<16x16xf32>
    %cst_2 = arith.constant dense<0.000000e+00> : vector<16xf32>
    %10 = vector.multi_reduction <add>, %9, %cst_2 [1] : vector<16x16xf32> to vector<16xf32>
    %11 = vector.shape_cast %10 : vector<16xf32> to vector<16x1xf32>
    %cst_3 = arith.constant 1.000000e+00 : f32
    %12 = vector.broadcast %cst_3 : f32 to vector<16x1xf32>
    %13 = arith.maximumf %11, %12 : vector<16x1xf32>
    %14 = math.rsqrt %13 : vector<16x1xf32>
    %c0_4 = arith.constant 0 : index
    %c0_5 = arith.constant 0 : index
    %c0_6 = arith.constant 0 : index
    %15 = vector.load %arg1[%c0_4, %c0_5, %c0_6] : memref<1x16x128xbf16, #tpu.memory_space<vmem>>, vector<1x16x128xbf16>
    %16 = vector.shape_cast %15 : vector<1x16x128xbf16> to vector<16x128xbf16>
    %c0_7 = arith.constant 0 : index
    %c0_8 = arith.constant 0 : index
    %17 = vector.load %arg3[%c0_7, %c0_8] : memref<128x128xbf16, #tpu.memory_space<vmem>>, vector<128x128xbf16>
    %c0_9 = arith.constant 0 : index
    %c0_10 = arith.constant 0 : index
    %18 = vector.load %arg4[%c0_9, %c0_10] : memref<1x128xf32, #tpu.memory_space<vmem>>, vector<1x128xf32>
    %cst_11 = arith.constant dense<0.000000e+00> : vector<16x128xf32>
    %19 = tpu.matmul %16, %17, %cst_11 {dimension_numbers = #tpu.dot_dimension_numbers<[1], [0], [0], [1], [0, 0, 1, 1], [], []>} : vector<16x128xbf16>, vector<128x128xbf16>, vector<16x128xf32> -> vector<16x128xf32>
    %20 = vector.broadcast %14 : vector<16x1xf32> to vector<16x128xf32>
    %21 = arith.mulf %20, %19 : vector<16x128xf32>
    %22 = arith.truncf %21 : vector<16x128xf32> to vector<16x128xbf16>
    %cst_12 = arith.constant dense<0.000000e+00> : vector<16x128xf32>
    %23 = tpu.matmul %8, %22, %cst_12 {dimension_numbers = #tpu.dot_dimension_numbers<[1], [0], [0], [1], [0, 0, 1, 1], [], []>} : vector<16x16xbf16>, vector<16x128xbf16>, vector<16x128xf32> -> vector<16x128xf32>
    %24 = vector.broadcast %14 : vector<16x1xf32> to vector<16x128xf32>
    %25 = arith.mulf %24, %23 : vector<16x128xf32>
    %26 = vector.broadcast %18 : vector<1x128xf32> to vector<16x128xf32>
    %27 = arith.addf %25, %26 : vector<16x128xf32>
    %cst_13 = arith.constant 0.000000e+00 : f32
    %28 = vector.broadcast %cst_13 : f32 to vector<16x128xf32>
    %29 = arith.maximumf %27, %28 : vector<16x128xf32>
    %c0_14 = arith.constant 0 : index
    %c0_15 = arith.constant 0 : index
    %30 = vector.load %arg5[%c0_14, %c0_15] : memref<128x128xbf16, #tpu.memory_space<vmem>>, vector<128x128xbf16>
    %c0_16 = arith.constant 0 : index
    %c0_17 = arith.constant 0 : index
    %31 = vector.load %arg6[%c0_16, %c0_17] : memref<1x128xf32, #tpu.memory_space<vmem>>, vector<1x128xf32>
    %32 = arith.truncf %29 : vector<16x128xf32> to vector<16x128xbf16>
    %cst_18 = arith.constant dense<0.000000e+00> : vector<16x128xf32>
    %33 = tpu.matmul %32, %30, %cst_18 {dimension_numbers = #tpu.dot_dimension_numbers<[1], [0], [0], [1], [0, 0, 1, 1], [], []>} : vector<16x128xbf16>, vector<128x128xbf16>, vector<16x128xf32> -> vector<16x128xf32>
    %34 = vector.broadcast %14 : vector<16x1xf32> to vector<16x128xf32>
    %35 = arith.mulf %34, %33 : vector<16x128xf32>
    %36 = arith.truncf %35 : vector<16x128xf32> to vector<16x128xbf16>
    %cst_19 = arith.constant dense<0.000000e+00> : vector<16x128xf32>
    %37 = tpu.matmul %8, %36, %cst_19 {dimension_numbers = #tpu.dot_dimension_numbers<[1], [0], [0], [1], [0, 0, 1, 1], [], []>} : vector<16x16xbf16>, vector<16x128xbf16>, vector<16x128xf32> -> vector<16x128xf32>
    %38 = vector.broadcast %14 : vector<16x1xf32> to vector<16x128xf32>
    %39 = arith.mulf %38, %37 : vector<16x128xf32>
    %40 = vector.broadcast %31 : vector<1x128xf32> to vector<16x128xf32>
    %41 = arith.addf %39, %40 : vector<16x128xf32>
    %cst_20 = arith.constant 0.000000e+00 : f32
    %42 = vector.broadcast %cst_20 : f32 to vector<16x128xf32>
    %43 = arith.maximumf %41, %42 : vector<16x128xf32>
    %c0_21 = arith.constant 0 : index
    %c0_22 = arith.constant 0 : index
    %c0_23 = arith.constant 0 : index
    %44 = vector.load %arg7[%c0_21, %c0_22, %c0_23] : memref<1x16x128xf32, #tpu.memory_space<vmem>>, vector<1x16x128xf32>
    %45 = vector.shape_cast %44 : vector<1x16x128xf32> to vector<16x128xf32>
    %46 = vector.shape_cast %43 : vector<16x128xf32> to vector<1x16x128xf32>
    tpu.vector_store %arg7[%c0_21, %c0_22, %c0_23], %46 {strides = array<i32>} : memref<1x16x128xf32, #tpu.memory_space<vmem>>, vector<1x16x128xf32>,
    return
  }
  func.func @transform_0(%arg0: i32) -> (i32, i32, i32) {
    %c0_i32 = arith.constant 0 : i32
    %c0_i32_0 = arith.constant 0 : i32
    %c0_i32_1 = arith.constant 0 : i32
    return %arg0, %c0_i32, %c0_i32_0 : i32, i32, i32
  }
  func.func @transform_1(%arg0: i32) -> (i32, i32, i32) {
    %c0_i32 = arith.constant 0 : i32
    %c0_i32_0 = arith.constant 0 : i32
    %c0_i32_1 = arith.constant 0 : i32
    return %arg0, %c0_i32, %c0_i32_0 : i32, i32, i32
  }
  func.func @transform_2(%arg0: i32) -> (i32, i32) {
    %c0_i32 = arith.constant 0 : i32
    %c0_i32_0 = arith.constant 0 : i32
    %c0_i32_1 = arith.constant 0 : i32
    return %c0_i32, %c0_i32_0 : i32, i32
  }
  func.func @transform_3(%arg0: i32) -> (i32, i32) {
    %c0_i32 = arith.constant 0 : i32
    %c0_i32_0 = arith.constant 0 : i32
    %c0_i32_1 = arith.constant 0 : i32
    return %c0_i32, %c0_i32_0 : i32, i32
  }
  func.func @transform_4(%arg0: i32) -> (i32, i32) {
    %c0_i32 = arith.constant 0 : i32
    %c0_i32_0 = arith.constant 0 : i32
    %c0_i32_1 = arith.constant 0 : i32
    return %c0_i32, %c0_i32_0 : i32, i32
  }
  func.func @transform_5(%arg0: i32) -> (i32, i32) {
    %c0_i32 = arith.constant 0 : i32
    %c0_i32_0 = arith.constant 0 : i32
    %c0_i32_1 = arith.constant 0 : i32
    return %c0_i32, %c0_i32_0 : i32, i32
  }
  func.func @transform_6(%arg0: i32) -> (i32, i32, i32) {
    %c0_i32 = arith.constant 0 : i32
    %c0_i32_0 = arith.constant 0 : i32
    %c0_i32_1 = arith.constant 0 : i32
    return %arg0, %c0_i32, %c0_i32_0 : i32, i32, i32
  }
}

</mosaic_0001>

<llo_original>
// kernel: tpu_custom_call.1
$region0: #{tpu_custom_call.1}
  #allocation0 [shape = 'u32[]', space=smem, size = 0x4, offset = 0x4, fixed_abs, tag = 'smem constant byte address 0x4 - core index']
  #allocation1 [shape = 'u32[72,128]{1,0:T(1,128)}', space=vmem, size = 0x9000, scoped, tag = 'internal scratch']
  %s0 = inlined_call_operand.hbm [shape: bf16[2,16,128], index: 0, kind: input, shape index: {}]
  %s1 = inlined_call_operand.hbm [shape: bf16[2,16,16], index: 1, kind: input, shape index: {}]
  %s2 = inlined_call_operand.hbm [shape: bf16[128,128], index: 2, kind: input, shape index: {}]
  %s3 = inlined_call_operand.vmem [shape: f32[1,128], index: 3, kind: input, shape index: {}]
  %s4 = inlined_call_operand.hbm [shape: bf16[128,128], index: 4, kind: input, shape index: {}]
  %s5 = inlined_call_operand.vmem [shape: f32[1,128], index: 5, kind: input, shape index: {}]
  %s6 = inlined_call_operand.hbm [shape: f32[2,16,128], index: 6, kind: output, shape index: {}]
  %s7 = sld [smem:[#allocation0]]
  $region73: #{tpu_custom_call.1} parent=0
    _
  %s9 = ssub.s32 1, %s7
  %s10 = scalar_select 0, %s9, %s7
  $region1: #{tpu_custom_call.1} parent=0
    #allocation2 [shape = 'u8[8192]{0}', space=vmem, size = 0x2000, scoped, tag = 'input window, operand 0']
    #allocation3 [shape = 's32[2]{0}', space=sflag, size = 0x8, scoped, tag = 'scoped memory for tpu_custom_call.1']
    #allocation4 [shape = 's32[2]{0}', space=sflag, size = 0x8, scoped, tag = 'scoped memory for tpu_custom_call.1']
    #allocation5 [shape = 'u8[8192]{0}', space=vmem, size = 0x2000, scoped, tag = 'input window, operand 1']
    #allocation6 [shape = 's32[2]{0}', space=sflag, size = 0x8, scoped, tag = 'scoped memory for tpu_custom_call.1']
    #allocation7 [shape = 'u8[32768]{0}', space=vmem, size = 0x8000, scoped, tag = 'input window, operand 2, single buffered']
    #allocation8 [shape = 'u8[32768]{0}', space=vmem, size = 0x8000, scoped, tag = 'input window, operand 4, single buffered']
    #allocation9 [shape = 's32[1]{0}', space=sflag, size = 0x4, scoped, tag = 'scoped memory for tpu_custom_call.1']
    #allocation10 [shape = 'u8[16384]{0}', space=vmem, size = 0x4000, scoped, tag = 'output window, operand 0']
    %11 = vsyncpa [#allocation3], 0
    %s12 = scalar_lea.sflag [#allocation3], 1
    %13 = vsyncpa %s12, 0
    %14 = vsyncpa [#allocation6], 0
    %s15 = scalar_lea.sflag [#allocation6], 1
    %16 = vsyncpa %s15, 0
    %17 = vsyncpa [#allocation9], 0
    %18 = vsyncpa [#allocation4], 0
    %s19 = scalar_lea.sflag [#allocation4], 1
    %20 = vsyncpa %s19, 0
    loop: start=0, step=1, limit=4
    $region2: #{tpu_custom_call.1} parent=1 // loop_pre_header
      _
    $region3: #{tpu_custom_call.1} parent=1 // loop_header
      %s22 = sphi 0, %s26
      %p23 = scmp.ge.s32.totalorder %s22, 4
      %s32 = sphi 0, %s34
      %s35 = sphi 0, %s32
      %s36 = sphi 0, %s35
      %s52 = sphi 0, %s36
      %s58 = sphi 0, %s60
      %s61 = sphi 0, %s58
      %s62 = sphi 0, %s61
      %s78 = sphi 0, %s62
      %s82 = sphi 0, %s82
      %s84 = sphi 0, %s82
      %s85 = sphi 0, %s84
      %s99 = sphi 0, %s85
      %s103 = sphi 0, %s103
      %s105 = sphi 0, %s103
      %s106 = sphi 0, %s105
      %s120 = sphi 0, %s106
      %s124 = sphi 0, %s124
      %s126 = sphi 0, %s124
      %s127 = sphi 0, %s126
      %s141 = sphi 0, %s127
      %s145 = sphi 0, %s145
      %s147 = sphi 0, %s145
      %s148 = sphi 0, %s147
      %s162 = sphi 0, %s148
      %s168 = sphi 0, %s170
      %s171 = sphi 0, %s168
      %s172 = sphi 0, %s171
      %s188 = sphi 0, %s172
    $region4: #{tpu_custom_call.1} parent=1 // loop_header_branch
      %25 = sbr.rel (%p23) target = $region8
    $region5: #{tpu_custom_call.1} parent=1 // loop_body
      %s27 = ssub.s32 %s22, 1
      %s28 = ssub.s32 %s22, 2
      %s29 = sadd.s32 %s22, 1
      %s30 = ssub.s32 %s22, %s29
      %p31 = scmp.eq.s32.totalorder %s30, 0
      %s33 = sadd.s32 %s32, 1
      %s34 = scalar_select %p31, %s32, %s33
      %p37 = pneg %p31
      %p38 = scmp.eq.s32.totalorder %s22, 1
      %p39 = por %p37, %p38
      %p40 = scmp.ne.s32.totalorder %s32, %s35
      %p41 = scmp.eq.s32.totalorder %s22, 0
      %p42 = por %p40, %p41
      %p43 = scmp.ne.s32.totalorder %s32, %s35
      %p44 = scmp.eq.s32.totalorder %s27, 1
      %p45 = por %p43, %p44
      %p46 = scmp.ne.s32.totalorder %s35, %s36
      %p47 = scmp.eq.s32.totalorder %s27, 0
      %p48 = por %p46, %p47
      %p49 = scmp.ne.s32.totalorder %s35, %s36
      %p50 = scmp.eq.s32.totalorder %s28, 1
      %p51 = por %p49, %p50
      %p53 = scmp.ne.s32.totalorder %s36, %s52
      %p54 = scmp.eq.s32.totalorder %s28, 0
      %p55 = por %p53, %p54
      %s56 = ssub.s32 %s22, %s29
      %p57 = scmp.eq.s32.totalorder %s56, 0
      %s59 = sadd.s32 %s58, 1
      %s60 = scalar_select %p57, %s58, %s59
      %p63 = pneg %p57
      %p64 = scmp.eq.s32.totalorder %s22, 1
      %p65 = por %p63, %p64
      %p66 = scmp.ne.s32.totalorder %s58, %s61
      %p67 = scmp.eq.s32.totalorder %s22, 0
      %p68 = por %p66, %p67
      %p69 = scmp.ne.s32.totalorder %s58, %s61
      %p70 = scmp.eq.s32.totalorder %s27, 1
      %p71 = por %p69, %p70
      %p72 = scmp.ne.s32.totalorder %s61, %s62
      %p73 = scmp.eq.s32.totalorder %s27, 0
      %p74 = por %p72, %p73
      %p75 = scmp.ne.s32.totalorder %s61, %s62
      %p76 = scmp.eq.s32.totalorder %s28, 1
      %p77 = por %p75, %p76
      %p79 = scmp.ne.s32.totalorder %s62, %s78
      %p80 = scmp.eq.s32.totalorder %s28, 0
      %p81 = por %p79, %p80
      %s83 = sadd.s32 %s82, 1
      %p86 = scmp.eq.s32.totalorder %s22, 1
      %p87 = scmp.ne.s32.totalorder %s82, %s84
      %p88 = scmp.eq.s32.totalorder %s22, 0
      %p89 = por %p87, %p88
      %p90 = scmp.ne.s32.totalorder %s82, %s84
      %p91 = scmp.eq.s32.totalorder %s27, 1
      %p92 = por %p90, %p91
      %p93 = scmp.ne.s32.totalorder %s84, %s85
      %p94 = scmp.eq.s32.totalorder %s27, 0
      %p95 = por %p93, %p94
      %p96 = scmp.ne.s32.totalorder %s84, %s85
      %p97 = scmp.eq.s32.totalorder %s28, 1
      %p98 = por %p96, %p97
      %p100 = scmp.ne.s32.totalorder %s85, %s99
      %p101 = scmp.eq.s32.totalorder %s28, 0
      %p102 = por %p100, %p101
      %s104 = sadd.s32 %s103, 1
      %p107 = scmp.eq.s32.totalorder %s22, 1
      %p108 = scmp.ne.s32.totalorder %s103, %s105
      %p109 = scmp.eq.s32.totalorder %s22, 0
      %p110 = por %p108, %p109
      %p111 = scmp.ne.s32.totalorder %s103, %s105
      %p112 = scmp.eq.s32.totalorder %s27, 1
      %p113 = por %p111, %p112
      %p114 = scmp.ne.s32.totalorder %s105, %s106
      %p115 = scmp.eq.s32.totalorder %s27, 0
      %p116 = por %p114, %p115
      %p117 = scmp.ne.s32.totalorder %s105, %s106
      %p118 = scmp.eq.s32.totalorder %s28, 1
      %p119 = por %p117, %p118
      %p121 = scmp.ne.s32.totalorder %s106, %s120
      %p122 = scmp.eq.s32.totalorder %s28, 0
      %p123 = por %p121, %p122
      %s125 = sadd.s32 %s124, 1
      %p128 = scmp.eq.s32.totalorder %s22, 1
      %p129 = scmp.ne.s32.totalorder %s124, %s126
      %p130 = scmp.eq.s32.totalorder %s22, 0
      %p131 = por %p129, %p130
      %p132 = scmp.ne.s32.totalorder %s124, %s126
      %p133 = scmp.eq.s32.totalorder %s27, 1
      %p134 = por %p132, %p133
      %p135 = scmp.ne.s32.totalorder %s126, %s127
      %p136 = scmp.eq.s32.totalorder %s27, 0
      %p137 = por %p135, %p136
      %p138 = scmp.ne.s32.totalorder %s126, %s127
      %p139 = scmp.eq.s32.totalorder %s28, 1
      %p140 = por %p138, %p139
      %p142 = scmp.ne.s32.totalorder %s127, %s141
      %p143 = scmp.eq.s32.totalorder %s28, 0
      %p144 = por %p142, %p143
      %s146 = sadd.s32 %s145, 1
      %p149 = scmp.eq.s32.totalorder %s22, 1
      %p150 = scmp.ne.s32.totalorder %s145, %s147
      %p151 = scmp.eq.s32.totalorder %s22, 0
      %p152 = por %p150, %p151
      %p153 = scmp.ne.s32.totalorder %s145, %s147
      %p154 = scmp.eq.s32.totalorder %s27, 1
      %p155 = por %p153, %p154
      %p156 = scmp.ne.s32.totalorder %s147, %s148
      %p157 = scmp.eq.s32.totalorder %s27, 0
      %p158 = por %p156, %p157
      %p159 = scmp.ne.s32.totalorder %s147, %s148
      %p160 = scmp.eq.s32.totalorder %s28, 1
      %p161 = por %p159, %p160
      %p163 = scmp.ne.s32.totalorder %s148, %s162
      %p164 = scmp.eq.s32.totalorder %s28, 0
      %p165 = por %p163, %p164
      %s166 = ssub.s32 %s22, %s29
      %p167 = scmp.eq.s32.totalorder %s166, 0
      %s169 = sadd.s32 %s168, 1
      %s170 = scalar_select %p167, %s168, %s169
      %p173 = pneg %p167
      %p174 = scmp.eq.s32.totalorder %s22, 1
      %p175 = por %p173, %p174
      %p176 = scmp.ne.s32.totalorder %s168, %s171
      %p177 = scmp.eq.s32.totalorder %s22, 0
      %p178 = por %p176, %p177
      %p179 = scmp.ne.s32.totalorder %s168, %s171
      %p180 = scmp.eq.s32.totalorder %s27, 1
      %p181 = por %p179, %p180
      %p182 = scmp.ne.s32.totalorder %s171, %s172
      %p183 = scmp.eq.s32.totalorder %s27, 0
      %p184 = por %p182, %p183
      %p185 = scmp.ne.s32.totalorder %s171, %s172
      %p186 = scmp.eq.s32.totalorder %s28, 1
      %p187 = por %p185, %p186
      %p189 = scmp.ne.s32.totalorder %s172, %s188
      %p190 = scmp.eq.s32.totalorder %s28, 0
      %p191 = por %p189, %p190
      %p192 = scmp.le.s32.totalorder 1, %s22
      %p193 = scmp.lt.s32.totalorder %s22, 3
      %p194 = pnand %p192, %p193
      %p195 = pneg %p194
      // Predicated region
      $region9: #{tpu_custom_call.1} parent=5 // pred_check
        _
      $region10: #{tpu_custom_call.1} parent=5 // pred_check_branch
        %197 = sbr.rel (%p194) target = $region12
      $region11: #{tpu_custom_call.1} parent=5 // pred_region
        %s198 = ssub.s32 %s22, 1
        // Predicated region
        $region13: #{tpu_custom_call.1} parent=11 // pred_check
          %p199 = pneg %p95
        $region14: #{tpu_custom_call.1} parent=11 // pred_check_branch
          %201 = sbr.rel (%p199) target = $region16
        $region15: #{tpu_custom_call.1} parent=11 // pred_region
          %203 = vsyncadd [#allocation6], 0
          %s204 = sshll.u32 %s2, 4
          %s205 = int_to_ptr.hbm [resolvable:$true] %s204
          %s206 = sshll.u32 [#allocation7], 4
          %s207 = int_to_ptr.vmem [resolvable:$true] %s206
          %212 = dma.hbm_to_vmem [thread:$0]  %s205, 1024, %s207, [#allocation6], 64, 64, 4
        $region16: #{tpu_custom_call.1} parent=11 // pred_fallthru
          _
        // Predicated region
        $region17: #{tpu_custom_call.1} parent=11 // pred_check
          %p213 = pneg %p116
        $region18: #{tpu_custom_call.1} parent=11 // pred_check_branch
          %215 = sbr.rel (%p213) target = $region20
        $region19: #{tpu_custom_call.1} parent=11 // pred_region
          _
        $region20: #{tpu_custom_call.1} parent=11 // pred_fallthru
          _
        // Predicated region
        $region21: #{tpu_custom_call.1} parent=11 // pred_check
          %p216 = pneg %p137
        $region22: #{tpu_custom_call.1} parent=11 // pred_check_branch
          %218 = sbr.rel (%p216) target = $region24
        $region23: #{tpu_custom_call.1} parent=11 // pred_region
          %220 = vsyncadd [#allocation9], 0
          %s221 = sshll.u32 %s4, 4
          %s222 = int_to_ptr.hbm [resolvable:$true] %s221
          %s223 = sshll.u32 [#allocation8], 4
          %s224 = int_to_ptr.vmem [resolvable:$true] %s223
          %229 = dma.hbm_to_vmem [thread:$0]  %s222, 1024, %s224, [#allocation9], 64, 64, 4
        $region24: #{tpu_custom_call.1} parent=11 // pred_fallthru
          _
        // Predicated region
        $region25: #{tpu_custom_call.1} parent=11 // pred_check
          %p230 = pneg %p158
        $region26: #{tpu_custom_call.1} parent=11 // pred_check_branch
          %232 = sbr.rel (%p230) target = $region28
        $region27: #{tpu_custom_call.1} parent=11 // pred_region
          _
        $region28: #{tpu_custom_call.1} parent=11 // pred_fallthru
          _
      $region12: #{tpu_custom_call.1} parent=5 // pred_fallthru
        _
      %p233 = scmp.lt.s32.totalorder %s22, 2
      // Predicated region
      $region29: #{tpu_custom_call.1} parent=5 // pred_check
        %p234 = pneg %p233
      $region30: #{tpu_custom_call.1} parent=5 // pred_check_branch
        %236 = sbr.rel (%p234) target = $region32
      $region31: #{tpu_custom_call.1} parent=5 // pred_region
        // Predicated region
        $region33: #{tpu_custom_call.1} parent=31 // pred_check
          %p237 = pneg %p42
        $region34: #{tpu_custom_call.1} parent=31 // pred_check_branch
          %239 = sbr.rel (%p237) target = $region36
        $region35: #{tpu_custom_call.1} parent=31 // pred_region
          %s240 = sand.u32 %s32, 1
          %s241 = scalar_lea.sflag [#allocation3], %s240
          %s242 = sand.u32 %s32, 1
          %s243 = smul.addr %s242, 8
          %s244 = scalar_lea.vmem [#allocation2], %s243
          %246 = vsyncadd %s241, 0
          %s247 = smul.addr %s22, 2
          %s248 = smul.addr %s247, 4
          %s249 = scalar_lea.hbm %s0, %s248
          %s250 = sshll.u32 %s249, 4
          %s251 = int_to_ptr.hbm [resolvable:$true] %s250
          %s252 = sshll.u32 %s244, 4
          %s253 = int_to_ptr.vmem [resolvable:$true] %s252
          %258 = dma.hbm_to_vmem [thread:$0]  %s251, 128, %s253, %s241, 64, 64, 4
        $region36: #{tpu_custom_call.1} parent=31 // pred_fallthru
          _
        // Predicated region
        $region37: #{tpu_custom_call.1} parent=31 // pred_check
          %p259 = pneg %p68
        $region38: #{tpu_custom_call.1} parent=31 // pred_check_branch
          %261 = sbr.rel (%p259) target = $region40
        $region39: #{tpu_custom_call.1} parent=31 // pred_region
          %s262 = sand.u32 %s22, 1
          %s263 = scalar_lea.sflag [#allocation6], %s262
          %s264 = sand.u32 %s58, 1
          %s265 = smul.addr %s264, 8
          %s266 = scalar_lea.vmem [#allocation5], %s265
          %268 = vsyncadd %s263, 0
          %s269 = smul.addr %s22, 2
          %s270 = smul.addr %s269, 4
          %s271 = scalar_lea.hbm %s1, %s270
          %s272 = sshll.u32 %s271, 4
          %s273 = int_to_ptr.hbm [resolvable:$true] %s272
          %s274 = sshll.u32 %s266, 4
          %s275 = int_to_ptr.vmem [resolvable:$true] %s274
          %280 = dma.hbm_to_vmem [thread:$0]  %s273, 128, %s275, %s263, 64, 64, 4
        $region40: #{tpu_custom_call.1} parent=31 // pred_fallthru
          _
      $region32: #{tpu_custom_call.1} parent=5 // pred_fallthru
        _
      %p281 = scmp.le.s32.totalorder 1, %s22
      %p282 = scmp.lt.s32.totalorder %s22, 3
      %p283 = pnand %p281, %p282
      %p284 = pneg %p283
      // Predicated region
      $region41: #{tpu_custom_call.1} parent=5 // pred_check
        _
      $region42: #{tpu_custom_call.1} parent=5 // pred_check_branch
        %286 = sbr.rel (%p283) target = $region44
      $region43: #{tpu_custom_call.1} parent=5 // pred_region
        %s287 = ssub.s32 %s22, 1
        %s288 = sand.u32 %s35, 1
        %s289 = scalar_lea.sflag [#allocation3], %s288
        %s290 = sand.u32 %s35, 1
        %s291 = smul.addr %s290, 8
        %s292 = scalar_lea.vmem [#allocation2], %s291
        // Predicated region
        $region45: #{tpu_custom_call.1} parent=43 // pred_check
          %p293 = pneg %p48
        $region46: #{tpu_custom_call.1} parent=43 // pred_check_branch
          %295 = sbr.rel (%p293) target = $region48
        $region47: #{tpu_custom_call.1} parent=43 // pred_region
          %297 = dma.done %s289, 128
        $region48: #{tpu_custom_call.1} parent=43 // pred_fallthru
          _
        %s298 = sand.u32 %s27, 1
        %s299 = scalar_lea.sflag [#allocation6], %s298
        %s300 = sand.u32 %s61, 1
        %s301 = smul.addr %s300, 8
        %s302 = scalar_lea.vmem [#allocation5], %s301
        // Predicated region
        $region49: #{tpu_custom_call.1} parent=43 // pred_check
          %p303 = pneg %p74
        $region50: #{tpu_custom_call.1} parent=43 // pred_check_branch
          %305 = sbr.rel (%p303) target = $region52
        $region51: #{tpu_custom_call.1} parent=43 // pred_region
          %307 = dma.done %s299, 128
        $region52: #{tpu_custom_call.1} parent=43 // pred_fallthru
          _
        // Predicated region
        $region53: #{tpu_custom_call.1} parent=43 // pred_check
          %p308 = pneg %p95
        $region54: #{tpu_custom_call.1} parent=43 // pred_check_branch
          %310 = sbr.rel (%p308) target = $region56
        $region55: #{tpu_custom_call.1} parent=43 // pred_region
          %312 = dma.done [#allocation6], 1024
        $region56: #{tpu_custom_call.1} parent=43 // pred_fallthru
          _
        // Predicated region
        $region57: #{tpu_custom_call.1} parent=43 // pred_check
          %p313 = pneg %p137
        $region58: #{tpu_custom_call.1} parent=43 // pred_check_branch
          %315 = sbr.rel (%p313) target = $region60
        $region59: #{tpu_custom_call.1} parent=43 // pred_region
          %317 = dma.done [#allocation9], 1024
        $region60: #{tpu_custom_call.1} parent=43 // pred_fallthru
          _
        %s318 = sand.u32 %s35, 1
        %s319 = scalar_lea.sflag [#allocation3], %s318
        %s320 = sand.u32 %s35, 1
        %s321 = smul.addr %s320, 8
        %s322 = scalar_lea.vmem [#allocation2], %s321
        %p323 = pneg %p48
        %p324 = pneg %p45
        %s325 = sand.u32 %s27, 1
        %s326 = scalar_lea.sflag [#allocation6], %s325
        %s327 = sand.u32 %s61, 1
        %s328 = smul.addr %s327, 8
        %s329 = scalar_lea.vmem [#allocation5], %s328
        %p330 = pneg %p74
        %p331 = pneg %p71
        %p332 = pneg %p95
        %p333 = pneg %p92
        %p334 = pneg %p116
        %p335 = pneg %p113
        %p336 = pneg %p137
        %p337 = pneg %p134
        %p338 = pneg %p158
        %p339 = pneg %p155
        %p340 = pneg %p184
        %p341 = pneg %p181
        %s342 = sand.u32 %s171, 1
        %s343 = scalar_lea.sflag [#allocation4], %s342
        %s344 = sand.u32 %s171, 1
        %s345 = smul.addr %s344, 16
        %s346 = scalar_lea.vmem [#allocation10], %s345
        %v349 = vld [vmem:[%s302] sm:$0xf]
        %v350 = vld [vmem:[%s302 + $0x4] sm:$0xf]
        %v351 = vlaneseq
        %v352 = vshrl.u32 %v351, 7
        %v353 = vadd.s32 %v352, 8
        %v354 = vlaneseq
        %v355 = vand.u32 %v354, 127
        %vm356 = vcmp.eq.s32.totalorder %v352, %v355
        %vm357 = vcmp.eq.s32.totalorder %v353, %v355
        %vm358 = vmpackc.low %vm356, %vm356
        %vm359 = vmpackc.low %vm357, %vm357
        %v360 = vsel %vm358, 1065369472, %v349
        %v361 = vsel %vm359, 1065369472, %v350
        %v362 = vunpack.c.l.bf16 %v360
        %v363 = vunpack.c.l.bf16 %v361
        %vm364 = vcmask 130048
        %v365 = vsel %vm364, %v362, 0.0
        %366 = vadd.xlane.f32.xlu0 %v365
        %v367 = vpop.xlane.xlu0 %366
        %v368 = vsel %vm364, %v363, 0.0
        %369 = vadd.xlane.f32.xlu0 %v368
        %v370 = vpop.xlane.xlu0 %369
        %v371 = vmax.f32 %v367, 1.0
        %v372 = vmax.f32 %v370, 1.0
        %v373 = vrsqrt.pop %v371
        %v374 = vmul.f32 %v373, %v371
        %v375 = vmul.f32 %v374, %v373
        %v376 = vmul.f32 0.5, %v375
        %v377 = vsub.f32 1.5, %v376
        %v378 = vmul.f32 %v373, %v377
        %vm379 = vweird.f32 %v371
        %vm380 = vweird.f32 %v373
        %vm381 = vmor %vm379, %vm380
        %v382 = vsel %vm381, %v373, %v378
        %v383 = vrsqrt.pop %v372
        %v384 = vmul.f32 %v383, %v372
        %v385 = vmul.f32 %v384, %v383
        %v386 = vmul.f32 0.5, %v385
        %v387 = vsub.f32 1.5, %v386
        %v388 = vmul.f32 %v383, %v387
        %vm389 = vweird.f32 %v372
        %vm390 = vweird.f32 %v383
        %vm391 = vmor %vm389, %vm390
        %v392 = vsel %vm391, %v383, %v388
        %v393 = vld [vmem:[%s292] sm:$0xf]
        %v394 = vld [vmem:[%s292 + $0x4] sm:$0xf]
        %v395 = vld [vmem:[#allocation7] sm:$0xf]
        %v396 = vld [vmem:[#allocation7 + $0x4] sm:$0xf]
        %v397 = vld [vmem:[#allocation7 + $0x8] sm:$0xf]
        %v398 = vld [vmem:[#allocation7 + $0xc] sm:$0xf]
        %v399 = vld [vmem:[#allocation7 + $0x10] sm:$0xf]
        %v400 = vld [vmem:[#allocation7 + $0x14] sm:$0xf]
        %v401 = vld [vmem:[#allocation7 + $0x18] sm:$0xf]
        %v402 = vld [vmem:[#allocation7 + $0x1c] sm:$0xf]
        %v403 = vld [vmem:[#allocation7 + $0x20] sm:$0xf]
        %v404 = vld [vmem:[#allocation7 + $0x24] sm:$0xf]
        %v405 = vld [vmem:[#allocation7 + $0x28] sm:$0xf]
        %v406 = vld [vmem:[#allocation7 + $0x2c] sm:$0xf]
        %v407 = vld [vmem:[#allocation7 + $0x30] sm:$0xf]
        %v408 = vld [vmem:[#allocation7 + $0x34] sm:$0xf]
        %v409 = vld [vmem:[#allocation7 + $0x38] sm:$0xf]
        %v410 = vld [vmem:[#allocation7 + $0x3c] sm:$0xf]
        %v411 = vld [vmem:[%s3] sm:$0x1]
        %v414 = vunpack.c.l.b16 %v393
        %v415 = vunpack.c.l.b16 %v394
        %v416 = vpack.c.b16 %v415, %v414
        %v434 = vunpack.c.l.b16 %v395
        %v435 = vunpack.c.l.b16 %v396
        %v436 = vunpack.c.l.b16 %v397
        %v437 = vunpack.c.l.b16 %v398
        %v438 = vunpack.c.l.b16 %v399
        %v439 = vunpack.c.l.b16 %v400
        %v440 = vunpack.c.l.b16 %v401
        %v441 = vunpack.c.l.b16 %v402
        %v442 = vunpack.c.l.b16 %v403
        %v443 = vunpack.c.l.b16 %v404
        %v444 = vunpack.c.l.b16 %v405
        %v445 = vunpack.c.l.b16 %v406
        %v446 = vunpack.c.l.b16 %v407
        %v447 = vunpack.c.l.b16 %v408
        %v448 = vunpack.c.l.b16 %v409
        %v449 = vunpack.c.l.b16 %v410
        %v450 = vpack.c.b16 %v435, %v434
        %v451 = vpack.c.b16 %v437, %v436
        %v452 = vpack.c.b16 %v439, %v438
        %v453 = vpack.c.b16 %v441, %v440
        %v454 = vpack.c.b16 %v443, %v442
        %v455 = vpack.c.b16 %v445, %v444
        %v456 = vpack.c.b16 %v447, %v446
        %v457 = vpack.c.b16 %v449, %v448
        %466 = vmatpush.bf16.msra.mxu0 %v457
        %467 = vmatpush.bf16.msra.mxu0 %v456
        %468 = vmatpush.bf16.msra.mxu0 %v455
        %469 = vmatpush.bf16.msra.mxu0 %v454
        %470 = vmatpush.bf16.msra.mxu0 %v453
        %471 = vmatpush.bf16.msra.mxu0 %v452
        %472 = vmatpush.bf16.msra.mxu0 %v451
        %473 = vmatpush.bf16.msra.mxu0 %v450
        %474 = vmatmul.bf16.gmra.mxu0 %v416
        %v475 = vpop.f32.mrf.mxu0
        %v476 = vadd.f32 0.0, %v475
        %v477 = vpop.f32.mrf.mxu0
        %v478 = vadd.f32 0.0, %v477
        %479 = vdwg.mxu0
        %v480 = vmul.f32 %v382, %v476
        %v481 = vmul.f32 %v392, %v478
        %v482 = vpack.c.bf16 %v481, %v480
        %v485 = vunpack.c.l.b16 %v360
        %v486 = vunpack.c.l.b16 %v361
        %v487 = vpack.c.b16 %v486, %v485
        %v489 = vsel %vm364, %v487, 0
        %491 = vmatpush.bf16.msra.mxu0 0
        %492 = vmatpush.bf16.msra.mxu0 0
        %493 = vmatpush.bf16.msra.mxu0 0
        %494 = vmatpush.bf16.msra.mxu0 0
        %495 = vmatpush.bf16.msra.mxu0 0
        %496 = vmatpush.bf16.msra.mxu0 0
        %497 = vmatpush.bf16.msra.mxu0 0
        %498 = vmatpush.bf16.msra.mxu0 %v482
        %499 = vmatmul.bf16.gmra.mxu0 %v489
        %v500 = vpop.f32.mrf.mxu0
        %v501 = vadd.f32 0.0, %v500
        %v502 = vpop.f32.mrf.mxu0
        %v503 = vadd.f32 0.0, %v502
        %504 = vdwg.mxu0
        %v505 = vmul.f32 %v382, %v501
        %v506 = vmul.f32 %v392, %v503
        %v508 = vperm.slane %v411, 0
        %v510 = vadd.f32 %v505, %v508
        %v511 = vadd.f32 %v506, %v508
        %v512 = vmax.f32 %v510, 0.0
        %v513 = vmax.f32 %v511, 0.0
        %v514 = vld [vmem:[#allocation8] sm:$0xf]
        %v515 = vld [vmem:[#allocation8 + $0x4] sm:$0xf]
        %v516 = vld [vmem:[#allocation8 + $0x8] sm:$0xf]
        %v517 = vld [vmem:[#allocation8 + $0xc] sm:$0xf]
        %v518 = vld [vmem:[#allocation8 + $0x10] sm:$0xf]
        %v519 = vld [vmem:[#allocation8 + $0x14] sm:$0xf]
        %v520 = vld [vmem:[#allocation8 + $0x18] sm:$0xf]
        %v521 = vld [vmem:[#allocation8 + $0x1c] sm:$0xf]
        %v522 = vld [vmem:[#allocation8 + $0x20] sm:$0xf]
        %v523 = vld [vmem:[#allocation8 + $0x24] sm:$0xf]
        %v524 = vld [vmem:[#allocation8 + $0x28] sm:$0xf]
        %v525 = vld [vmem:[#allocation8 + $0x2c] sm:$0xf]
        %v526 = vld [vmem:[#allocation8 + $0x30] sm:$0xf]
        %v527 = vld [vmem:[#allocation8 + $0x34] sm:$0xf]
        %v528 = vld [vmem:[#allocation8 + $0x38] sm:$0xf]
        %v529 = vld [vmem:[#allocation8 + $0x3c] sm:$0xf]
        %v530 = vld [vmem:[%s5] sm:$0x1]
        %v531 = vpack.c.bf16 %v513, %v512
        %v548 = vunpack.c.l.b16 %v514
        %v549 = vunpack.c.l.b16 %v515
        %v550 = vunpack.c.l.b16 %v516
        %v551 = vunpack.c.l.b16 %v517
        %v552 = vunpack.c.l.b16 %v518
        %v553 = vunpack.c.l.b16 %v519
        %v554 = vunpack.c.l.b16 %v520
        %v555 = vunpack.c.l.b16 %v521
        %v556 = vunpack.c.l.b16 %v522
        %v557 = vunpack.c.l.b16 %v523
        %v558 = vunpack.c.l.b16 %v524
        %v559 = vunpack.c.l.b16 %v525
        %v560 = vunpack.c.l.b16 %v526
        %v561 = vunpack.c.l.b16 %v527
        %v562 = vunpack.c.l.b16 %v528
        %v563 = vunpack.c.l.b16 %v529
        %v564 = vpack.c.b16 %v549, %v548
        %v565 = vpack.c.b16 %v551, %v550
        %v566 = vpack.c.b16 %v553, %v552
        %v567 = vpack.c.b16 %v555, %v554
        %v568 = vpack.c.b16 %v557, %v556
        %v569 = vpack.c.b16 %v559, %v558
        %v570 = vpack.c.b16 %v561, %v560
        %v571 = vpack.c.b16 %v563, %v562
        %580 = vmatpush.bf16.msra.mxu0 %v571
        %581 = vmatpush.bf16.msra.mxu0 %v570
        %582 = vmatpush.bf16.msra.mxu0 %v569
        %583 = vmatpush.bf16.msra.mxu0 %v568
        %584 = vmatpush.bf16.msra.mxu0 %v567
        %585 = vmatpush.bf16.msra.mxu0 %v566
        %586 = vmatpush.bf16.msra.mxu0 %v565
        %587 = vmatpush.bf16.msra.mxu0 %v564
        %588 = vmatmul.bf16.gmra.mxu0 %v531
        %v589 = vpop.f32.mrf.mxu0
        %v590 = vadd.f32 0.0, %v589
        %v591 = vpop.f32.mrf.mxu0
        %v592 = vadd.f32 0.0, %v591
        %593 = vdwg.mxu0
        %v594 = vmul.f32 %v382, %v590
        %v595 = vmul.f32 %v392, %v592
        %v596 = vpack.c.bf16 %v595, %v594
        %597 = vmatpush.bf16.msra.mxu0 0
        %598 = vmatpush.bf16.msra.mxu0 0
        %599 = vmatpush.bf16.msra.mxu0 0
        %600 = vmatpush.bf16.msra.mxu0 0
        %601 = vmatpush.bf16.msra.mxu0 0
        %602 = vmatpush.bf16.msra.mxu0 0
        %603 = vmatpush.bf16.msra.mxu0 0
        %604 = vmatpush.bf16.msra.mxu0 %v596
        %605 = vmatmul.bf16.gmra.mxu0 %v489
        %v606 = vpop.f32.mrf.mxu0
        %v607 = vadd.f32 0.0, %v606
        %v608 = vpop.f32.mrf.mxu0
        %v609 = vadd.f32 0.0, %v608
        %610 = vdwg.mxu0
        %v611 = vmul.f32 %v382, %v607
        %v612 = vmul.f32 %v392, %v609
        %v614 = vperm.slane %v530, 0
        %v616 = vadd.f32 %v611, %v614
        %v617 = vadd.f32 %v612, %v614
        %v618 = vmax.f32 %v616, 0.0
        %v619 = vmax.f32 %v617, 0.0
        %620 = vst [vmem:[%s346] sm:$0xff] %v618
        %621 = vst [vmem:[%s346 + $0x8] sm:$0xff] %v619
        %s622 = sand.u32 %s171, 1
        %s623 = scalar_lea.sflag [#allocation4], %s622
        %s624 = sand.u32 %s171, 1
        %s625 = smul.addr %s624, 16
        %s626 = scalar_lea.vmem [#allocation10], %s625
        // Predicated region
        $region61: #{tpu_custom_call.1} parent=43 // pred_check
          %p627 = pneg %p181
        $region62: #{tpu_custom_call.1} parent=43 // pred_check_branch
          %629 = sbr.rel (%p627) target = $region64
        $region63: #{tpu_custom_call.1} parent=43 // pred_region
          %631 = vsyncadd %s623, 0
          %s632 = smul.addr %s27, 2
          %s633 = smul.addr %s632, 8
          %s634 = scalar_lea.hbm %s6, %s633
          %s635 = sshll.u32 %s626, 4
          %s636 = int_to_ptr.vmem [resolvable:$true] %s635
          %s637 = sshll.u32 %s634, 4
          %s638 = int_to_ptr.hbm [resolvable:$true] %s637
          %643 = dma.vmem_to_hbm [thread:$0]  %s636, 256, %s638, %s623, 128, 128, 8
        $region64: #{tpu_custom_call.1} parent=43 // pred_fallthru
          _
      $region44: #{tpu_custom_call.1} parent=5 // pred_fallthru
        _
      %p644 = scmp.le.s32.totalorder 2, %s22
      // Predicated region
      $region65: #{tpu_custom_call.1} parent=5 // pred_check
        %p645 = pneg %p644
      $region66: #{tpu_custom_call.1} parent=5 // pred_check_branch
        %647 = sbr.rel (%p645) target = $region68
      $region67: #{tpu_custom_call.1} parent=5 // pred_region
        %s648 = ssub.s32 %s22, 2
        // Predicated region
        $region69: #{tpu_custom_call.1} parent=67 // pred_check
          %p649 = pneg %p187
        $region70: #{tpu_custom_call.1} parent=67 // pred_check_branch
          %651 = sbr.rel (%p649) target = $region72
        $region71: #{tpu_custom_call.1} parent=67 // pred_region
          %s652 = sand.u32 %s172, 1
          %s653 = scalar_lea.sflag [#allocation4], %s652
          %s654 = sand.u32 %s172, 1
          %s655 = smul.addr %s654, 16
          %s656 = scalar_lea.vmem [#allocation10], %s655
          %658 = dma.done %s653, 256
        $region72: #{tpu_custom_call.1} parent=67 // pred_fallthru
          _
      $region68: #{tpu_custom_call.1} parent=5 // pred_fallthru
        _
    $region6: #{tpu_custom_call.1} parent=1 // loop_footer
      %s26 = sadd.s32 1, %s22
    $region7: #{tpu_custom_call.1} parent=1 // loop_footer_branch
      %21 = sbr.rel target = $region3
    $region8: #{tpu_custom_call.1} parent=1 // loop_exit
      _
    %659 = vsyncpa [#allocation3], 1
    %s660 = scalar_lea.sflag [#allocation3], 1
    %661 = vsyncpa %s660, 1
    %662 = vsyncpa [#allocation6], 1
    %s663 = scalar_lea.sflag [#allocation6], 1
    %664 = vsyncpa %s663, 1
    %665 = vsyncpa [#allocation9], 1
    %666 = vsyncpa [#allocation4], 1
    %s667 = scalar_lea.sflag [#allocation4], 1
    %668 = vsyncpa %s667, 1

</llo_original>
